<compile_context>
chip_gen: v7x
topology: tpu7x:2x2x1
jax: 0.10.0
libtpu: 0.0.40
codegen_flags: <defaults>
</compile_context>

<pallas_src>
import functools

import jax
import jax.numpy as jnp
from jax.experimental import pallas as pl
from jax.experimental.pallas import tpu as pltpu

_HIDDEN = 16
_MAX_TB = 2048      # max batch-tile (lane) width per grid step
_CHUNK = 512        # in-kernel lane chunk; keeps live vregs well under 64


def init_critic_params(key, state_dim, action_dim):
    """nn.Linear default init (U[-1/sqrt(fan_in), 1/sqrt(fan_in)]), PyTorch layout:
    w (out_features, in_features), b (out_features,)."""
    dims = [(state_dim + action_dim, _HIDDEN), (_HIDDEN, _HIDDEN), (_HIDDEN, 1)]
    params = {}
    for i, (fan_in, fan_out) in enumerate(dims, start=1):
        key, kw, kb = jax.random.split(key, 3)
        bound = 1.0 / (fan_in ** 0.5)
        params[f"w{i}"] = jax.random.uniform(
            kw, (fan_out, fan_in), jnp.float32, -bound, bound)
        params[f"b{i}"] = jax.random.uniform(
            kb, (fan_out,), jnp.float32, -bound, bound)
    return params


def pack_critic_params(params):
    """Pack PyTorch-layout Critic params into ONE (16, S+A+20) f32 slab.

    Column layout (IN = S+A):
      [0:IN)  W1 | [IN] b1 | [IN+1:IN+17) W2 | [IN+17] b2 | [IN+18] W3^T | [IN+19] b3
    Done once at init time so the hot path issues a single parameter DMA.
    """
    w1 = jnp.asarray(params["w1"], jnp.float32)                        # (16, IN)
    b1 = jnp.asarray(params["b1"], jnp.float32).reshape(_HIDDEN, 1)
    w2 = jnp.asarray(params["w2"], jnp.float32)                        # (16, 16)
    b2 = jnp.asarray(params["b2"], jnp.float32).reshape(_HIDDEN, 1)
    w3 = jnp.asarray(params["w3"], jnp.float32).reshape(1, _HIDDEN).T  # (16, 1)
    b3 = jnp.broadcast_to(
        jnp.asarray(params["b3"], jnp.float32).reshape(1, 1), (_HIDDEN, 1))
    return jnp.concatenate([w1, b1, w2, b2, w3, b3], axis=1)


@functools.lru_cache(maxsize=1)
def _num_tensorcores():
    """Best-effort TC-per-device count: 2 for v7x-class chips, else 1."""
    try:
        kind = jax.devices()[0].device_kind.lower()
    except Exception:  # pragma: no cover - no accelerator visible
        return 1
    return 2 if ("v7" in kind or "7x" in kind) else 1


def _batch_tile(B):
    """Pick the batch tile (lane) width.

    Single-TC chips (v5e/v6e): minimize grid steps -- one full-width tile up to
    _MAX_TB; the kernel bounds vreg pressure with an internal lane-chunk loop.
    Dual-TC chips (v7x): an even number of equal 128-aligned tiles so the
    "parallel" grid axis shards evenly across both TensorCores.
    Above _MAX_TB*n_tc the tiles are balanced (no mostly-padded tail tile).
    """
    n_tc = _num_tensorcores()
    if B <= 128 or (n_tc == 1 and B <= _MAX_TB):
        return B                               # full dim: legal even if not %128
    n_tiles = n_tc * pl.cdiv(B, n_tc * _MAX_TB)
    return 128 * pl.cdiv(B, 128 * n_tiles)     # balanced, 128-aligned tiles


def _mlp_chunk(p, x, IN):
    """Fused concat + 3-layer MLP on one feature-major (IN, width) chunk.

    Returns the lane-dense (1, width) q row.  All contractions are unrolled
    VPU broadcast-FMAs plus one XLU sublane reduce; a 16x16 matmul would waste
    the MXU here (only worth revisiting if a bundle dump shows VALU binding).
    """
    H = _HIDDEN
    b1 = p[:, IN:IN + 1]                    # (H, 1)
    h1 = b1
    for k in range(IN):                     # fc1 (+ fused concat)
        h1 = h1 + p[:, k:k + 1] * x[k:k + 1, :]
    h1 = jnp.maximum(h1, 0.0)               # (H, width)

    b2 = p[:, IN + 1 + H:IN + 2 + H]        # (H, 1)
    h2 = b2
    for k in range(H):                      # fc2
        h2 = h2 + p[:, IN + 1 + k:IN + 2 + k] * h1[k:k + 1, :]
    h2 = jnp.maximum(h2, 0.0)               # (H, width)

    w3 = p[:, IN + 2 + H:IN + 3 + H]        # (H, 1)
    b3 = p[0:1, IN + 3 + H:IN + 4 + H]      # (1, 1)
    return jnp.sum(h2 * w3, axis=0, keepdims=True) + b3   # (1, width)


def _critic_kernel(x_ref, p_ref, o_ref, *, IN, TB):
    """x_ref: (IN, TB) feature-major inputs, p_ref: (16, IN+20) weight slab,
    o_ref: (1, TB) lane-dense q.  Wide tiles are processed in _CHUNK-lane
    pieces inside a pl.loop so activation live ranges stay ~16 vregs."""
    p = p_ref[...]                          # tiny, VMEM-resident weight slab

    if TB <= _CHUNK:                        # small tile: single shot, no loop
        o_ref[...] = _mlp_chunk(p, x_ref[...], IN).astype(o_ref.dtype)
        return

    n_full = TB // _CHUNK
    rem = TB - n_full * _CHUNK

    @pl.loop(0, n_full)                     # bounds live ranges (vs unrolled for)
    def _(c):
        start = pl.multiple_of(c * _CHUNK, _CHUNK)
        x = x_ref[:, pl.ds(start, _CHUNK)]
        o_ref[:, pl.ds(start, _CHUNK)] = _mlp_chunk(p, x, IN).astype(o_ref.dtype)

    if rem > 0:                             # static tail chunk
        start = n_full * _CHUNK
        x = x_ref[:, start:start + rem]
        o_ref[:, start:start + rem] = _mlp_chunk(p, x, IN).astype(o_ref.dtype)


def critic_forward_feature_major(x_fm, packed_params):
    """Critic forward on a feature-major input.

    x_fm          : (S+A, B) float32 -- rows are [state; action] features
    packed_params : (16, S+A+20) f32 slab from pack_critic_params
    returns (1, B) float32 lane-dense q row.
    """
    x_fm = jnp.asarray(x_fm, jnp.float32)
    packed = jnp.asarray(packed_params, jnp.float32)
    IN, B = x_fm.shape
    H, C = packed.shape
    assert H == _HIDDEN and C == IN + 20, "packed_params layout mismatch"

    TB = _batch_tile(B)
    grid = (pl.cdiv(B, TB),)

    kernel = functools.partial(_critic_kernel, IN=IN, TB=TB)
    flops = 2 * B * (IN * _HIDDEN + _HIDDEN * _HIDDEN + _HIDDEN)
    bytes_accessed = 4 * (B * IN + B + H * C)

    return pl.pallas_call(
        kernel,
        out_shape=jax.ShapeDtypeStruct((1, B), jnp.float32),
        grid=grid,
        in_specs=[
            pl.BlockSpec((IN, TB), lambda i: (0, i)),     # single input block
            pl.BlockSpec((H, C), lambda i: (0, 0)),       # weights stay resident
        ],
        out_specs=pl.BlockSpec((1, TB), lambda i: (0, i)),
        compiler_params=pltpu.CompilerParams(
            dimension_semantics=("parallel",)),
        cost_estimate=pl.CostEstimate(
            flops=flops, transcendentals=0, bytes_accessed=bytes_accessed),
    )(x_fm, packed)


def critic_forward(state, action, packed_params):
    """Pallas Critic.forward (PyTorch batch-major interface).

    state  : (B, state_dim)   any numeric dtype (cast to f32, @to_torch semantics)
    action : (B, action_dim)
    returns (B, 1) float32

    Producers that already hold feature-major data should call
    critic_forward_feature_major directly and skip the concat/transpose below.
    """
    state = jnp.asarray(state, jnp.float32)
    action = jnp.asarray(action, jnp.float32)
    B = state.shape[0]
    x_fm = jnp.concatenate([state, action], axis=1).T     # (S+A, B), tiny HLO
    q_row = critic_forward_feature_major(x_fm, packed_params)
    return q_row.reshape(B, 1)                            # (1,B)->(B,1): free


def _reference_forward(state, action, params):
    x = jnp.concatenate([state, action], axis=-1).astype(jnp.float32)
    h1 = jnp.maximum(x @ params["w1"].T + params["b1"], 0.0)
    h2 = jnp.maximum(h1 @ params["w2"].T + params["b2"], 0.0)
    return h2 @ params["w3"].T + params["b3"]


if __name__ == "__main__":
    # MountainCarContinuous-v0: state_dim=2, action_dim=1.
    state_dim, action_dim, batch = 2, 1, 8

    key = jax.random.PRNGKey(0)
    key, ks, ka, kp = jax.random.split(key, 4)
    state = jax.random.normal(ks, (batch, state_dim), jnp.float32)
    action = jax.random.normal(ka, (batch, action_dim), jnp.float32)
    params = init_critic_params(kp, state_dim, action_dim)
    packed = pack_critic_params(params)     # one-time, init-side packing

    q = jax.block_until_ready(critic_forward(state, action, packed))
    q_ref = _reference_forward(state, action, params)
    assert q.shape == (batch, 1)
    assert jnp.allclose(q, q_ref, atol=1e-5, rtol=1e-5)

    # Training-scale batches: exercise the in-kernel 512-lane chunk loop
    # (with remainder), balanced tiling, and the multi-step parallel grid.
    for big_b in (1280, 2500):
        key, ks2, ka2 = jax.random.split(key, 3)
        state2 = jax.random.normal(ks2, (big_b, state_dim), jnp.float32)
        action2 = jax.random.normal(ka2, (big_b, action_dim), jnp.float32)
        q2 = jax.block_until_ready(critic_forward(state2, action2, packed))
        q2_ref = _reference_forward(state2, action2, params)
        assert q2.shape == (big_b, 1)
        assert jnp.allclose(q2, q2_ref, atol=1e-5, rtol=1e-5)

    print("KERNEL_OK")
</pallas_src>

<mosaic_0001>
module attributes {stable_mosaic.version = 11 : i64} {
  func.func @_critic_kernel(%arg0: i32, %arg1: memref<3x8xf32, #tpu.memory_space<vmem>>, %arg2: memref<16x23xf32, #tpu.memory_space<vmem>>, %arg3: memref<1x8xf32, #tpu.memory_space<vmem>>) attributes {dimension_semantics = [#tpu.dimension_semantics<parallel>], iteration_bounds = array<i64: 1>, scalar_prefetch = 0 : i64, scratch_operands = 0 : i64, tpu.core_type = #tpu.core_type<tc>, window_params = [{transform_indices = @transform_0, window_bounds = array<i64: 3, 8>}, {pipeline_mode = #tpu.pipeline_mode<synchronous>, transform_indices = @transform_1, window_bounds = array<i64: 16, 23>}, {transform_indices = @transform_2, window_bounds = array<i64: 1, 8>}]} {
    %c0 = arith.constant 0 : index
    %c0_0 = arith.constant 0 : index
    %0 = vector.load %arg2[%c0, %c0_0] : memref<16x23xf32, #tpu.memory_space<vmem>>, vector<16x23xf32>
    %c0_1 = arith.constant 0 : index
    %c0_2 = arith.constant 0 : index
    %1 = vector.load %arg1[%c0_1, %c0_2] : memref<3x8xf32, #tpu.memory_space<vmem>>, vector<3x8xf32>
    %2 = vector.extract_strided_slice %0 {offsets = [0, 3], sizes = [16, 1], strides = [1, 1]} : vector<16x23xf32> to vector<16x1xf32>
    %3 = vector.extract_strided_slice %0 {offsets = [0, 0], sizes = [16, 1], strides = [1, 1]} : vector<16x23xf32> to vector<16x1xf32>
    %4 = vector.extract_strided_slice %1 {offsets = [0, 0], sizes = [1, 8], strides = [1, 1]} : vector<3x8xf32> to vector<1x8xf32>
    %5 = vector.broadcast %3 : vector<16x1xf32> to vector<16x8xf32>
    %6 = vector.broadcast %4 : vector<1x8xf32> to vector<16x8xf32>
    %7 = arith.mulf %5, %6 : vector<16x8xf32>
    %8 = vector.broadcast %2 : vector<16x1xf32> to vector<16x8xf32>
    %9 = arith.addf %8, %7 : vector<16x8xf32>
    %10 = vector.extract_strided_slice %0 {offsets = [0, 1], sizes = [16, 1], strides = [1, 1]} : vector<16x23xf32> to vector<16x1xf32>
    %11 = vector.extract_strided_slice %1 {offsets = [1, 0], sizes = [1, 8], strides = [1, 1]} : vector<3x8xf32> to vector<1x8xf32>
    %12 = vector.broadcast %10 : vector<16x1xf32> to vector<16x8xf32>
    %13 = vector.broadcast %11 : vector<1x8xf32> to vector<16x8xf32>
    %14 = arith.mulf %12, %13 : vector<16x8xf32>
    %15 = arith.addf %9, %14 : vector<16x8xf32>
    %16 = vector.extract_strided_slice %0 {offsets = [0, 2], sizes = [16, 1], strides = [1, 1]} : vector<16x23xf32> to vector<16x1xf32>
    %17 = vector.extract_strided_slice %1 {offsets = [2, 0], sizes = [1, 8], strides = [1, 1]} : vector<3x8xf32> to vector<1x8xf32>
    %18 = vector.broadcast %16 : vector<16x1xf32> to vector<16x8xf32>
    %19 = vector.broadcast %17 : vector<1x8xf32> to vector<16x8xf32>
    %20 = arith.mulf %18, %19 : vector<16x8xf32>
    %21 = arith.addf %15, %20 : vector<16x8xf32>
    %cst = arith.constant 0.000000e+00 : f32
    %22 = vector.broadcast %cst : f32 to vector<16x8xf32>
    %23 = arith.maximumf %21, %22 : vector<16x8xf32>
    %24 = vector.extract_strided_slice %0 {offsets = [0, 20], sizes = [16, 1], strides = [1, 1]} : vector<16x23xf32> to vector<16x1xf32>
    %25 = vector.extract_strided_slice %0 {offsets = [0, 4], sizes = [16, 1], strides = [1, 1]} : vector<16x23xf32> to vector<16x1xf32>
    %26 = vector.extract_strided_slice %23 {offsets = [0, 0], sizes = [1, 8], strides = [1, 1]} : vector<16x8xf32> to vector<1x8xf32>
    %27 = vector.broadcast %25 : vector<16x1xf32> to vector<16x8xf32>
    %28 = vector.broadcast %26 : vector<1x8xf32> to vector<16x8xf32>
    %29 = arith.mulf %27, %28 : vector<16x8xf32>
    %30 = vector.broadcast %24 : vector<16x1xf32> to vector<16x8xf32>
    %31 = arith.addf %30, %29 : vector<16x8xf32>
    %32 = vector.extract_strided_slice %0 {offsets = [0, 5], sizes = [16, 1], strides = [1, 1]} : vector<16x23xf32> to vector<16x1xf32>
    %33 = vector.extract_strided_slice %23 {offsets = [1, 0], sizes = [1, 8], strides = [1, 1]} : vector<16x8xf32> to vector<1x8xf32>
    %34 = vector.broadcast %32 : vector<16x1xf32> to vector<16x8xf32>
    %35 = vector.broadcast %33 : vector<1x8xf32> to vector<16x8xf32>
    %36 = arith.mulf %34, %35 : vector<16x8xf32>
    %37 = arith.addf %31, %36 : vector<16x8xf32>
    %38 = vector.extract_strided_slice %0 {offsets = [0, 6], sizes = [16, 1], strides = [1, 1]} : vector<16x23xf32> to vector<16x1xf32>
    %39 = vector.extract_strided_slice %23 {offsets = [2, 0], sizes = [1, 8], strides = [1, 1]} : vector<16x8xf32> to vector<1x8xf32>
    %40 = vector.broadcast %38 : vector<16x1xf32> to vector<16x8xf32>
    %41 = vector.broadcast %39 : vector<1x8xf32> to vector<16x8xf32>
    %42 = arith.mulf %40, %41 : vector<16x8xf32>
    %43 = arith.addf %37, %42 : vector<16x8xf32>
    %44 = vector.extract_strided_slice %0 {offsets = [0, 7], sizes = [16, 1], strides = [1, 1]} : vector<16x23xf32> to vector<16x1xf32>
    %45 = vector.extract_strided_slice %23 {offsets = [3, 0], sizes = [1, 8], strides = [1, 1]} : vector<16x8xf32> to vector<1x8xf32>
    %46 = vector.broadcast %44 : vector<16x1xf32> to vector<16x8xf32>
    %47 = vector.broadcast %45 : vector<1x8xf32> to vector<16x8xf32>
    %48 = arith.mulf %46, %47 : vector<16x8xf32>
    %49 = arith.addf %43, %48 : vector<16x8xf32>
    %50 = vector.extract_strided_slice %0 {offsets = [0, 8], sizes = [16, 1], strides = [1, 1]} : vector<16x23xf32> to vector<16x1xf32>
    %51 = vector.extract_strided_slice %23 {offsets = [4, 0], sizes = [1, 8], strides = [1, 1]} : vector<16x8xf32> to vector<1x8xf32>
    %52 = vector.broadcast %50 : vector<16x1xf32> to vector<16x8xf32>
    %53 = vector.broadcast %51 : vector<1x8xf32> to vector<16x8xf32>
    %54 = arith.mulf %52, %53 : vector<16x8xf32>
    %55 = arith.addf %49, %54 : vector<16x8xf32>
    %56 = vector.extract_strided_slice %0 {offsets = [0, 9], sizes = [16, 1], strides = [1, 1]} : vector<16x23xf32> to vector<16x1xf32>
    %57 = vector.extract_strided_slice %23 {offsets = [5, 0], sizes = [1, 8], strides = [1, 1]} : vector<16x8xf32> to vector<1x8xf32>
    %58 = vector.broadcast %56 : vector<16x1xf32> to vector<16x8xf32>
    %59 = vector.broadcast %57 : vector<1x8xf32> to vector<16x8xf32>
    %60 = arith.mulf %58, %59 : vector<16x8xf32>
    %61 = arith.addf %55, %60 : vector<16x8xf32>
    %62 = vector.extract_strided_slice %0 {offsets = [0, 10], sizes = [16, 1], strides = [1, 1]} : vector<16x23xf32> to vector<16x1xf32>
    %63 = vector.extract_strided_slice %23 {offsets = [6, 0], sizes = [1, 8], strides = [1, 1]} : vector<16x8xf32> to vector<1x8xf32>
    %64 = vector.broadcast %62 : vector<16x1xf32> to vector<16x8xf32>
    %65 = vector.broadcast %63 : vector<1x8xf32> to vector<16x8xf32>
    %66 = arith.mulf %64, %65 : vector<16x8xf32>
    %67 = arith.addf %61, %66 : vector<16x8xf32>
    %68 = vector.extract_strided_slice %0 {offsets = [0, 11], sizes = [16, 1], strides = [1, 1]} : vector<16x23xf32> to vector<16x1xf32>
    %69 = vector.extract_strided_slice %23 {offsets = [7, 0], sizes = [1, 8], strides = [1, 1]} : vector<16x8xf32> to vector<1x8xf32>
    %70 = vector.broadcast %68 : vector<16x1xf32> to vector<16x8xf32>
    %71 = vector.broadcast %69 : vector<1x8xf32> to vector<16x8xf32>
    %72 = arith.mulf %70, %71 : vector<16x8xf32>
    %73 = arith.addf %67, %72 : vector<16x8xf32>
    %74 = vector.extract_strided_slice %0 {offsets = [0, 12], sizes = [16, 1], strides = [1, 1]} : vector<16x23xf32> to vector<16x1xf32>
    %75 = vector.extract_strided_slice %23 {offsets = [8, 0], sizes = [1, 8], strides = [1, 1]} : vector<16x8xf32> to vector<1x8xf32>
    %76 = vector.broadcast %74 : vector<16x1xf32> to vector<16x8xf32>
    %77 = vector.broadcast %75 : vector<1x8xf32> to vector<16x8xf32>
    %78 = arith.mulf %76, %77 : vector<16x8xf32>
    %79 = arith.addf %73, %78 : vector<16x8xf32>
    %80 = vector.extract_strided_slice %0 {offsets = [0, 13], sizes = [16, 1], strides = [1, 1]} : vector<16x23xf32> to vector<16x1xf32>
    %81 = vector.extract_strided_slice %23 {offsets = [9, 0], sizes = [1, 8], strides = [1, 1]} : vector<16x8xf32> to vector<1x8xf32>
    %82 = vector.broadcast %80 : vector<16x1xf32> to vector<16x8xf32>
    %83 = vector.broadcast %81 : vector<1x8xf32> to vector<16x8xf32>
    %84 = arith.mulf %82, %83 : vector<16x8xf32>
    %85 = arith.addf %79, %84 : vector<16x8xf32>
    %86 = vector.extract_strided_slice %0 {offsets = [0, 14], sizes = [16, 1], strides = [1, 1]} : vector<16x23xf32> to vector<16x1xf32>
    %87 = vector.extract_strided_slice %23 {offsets = [10, 0], sizes = [1, 8], strides = [1, 1]} : vector<16x8xf32> to vector<1x8xf32>
    %88 = vector.broadcast %86 : vector<16x1xf32> to vector<16x8xf32>
    %89 = vector.broadcast %87 : vector<1x8xf32> to vector<16x8xf32>
    %90 = arith.mulf %88, %89 : vector<16x8xf32>
    %91 = arith.addf %85, %90 : vector<16x8xf32>
    %92 = vector.extract_strided_slice %0 {offsets = [0, 15], sizes = [16, 1], strides = [1, 1]} : vector<16x23xf32> to vector<16x1xf32>
    %93 = vector.extract_strided_slice %23 {offsets = [11, 0], sizes = [1, 8], strides = [1, 1]} : vector<16x8xf32> to vector<1x8xf32>
    %94 = vector.broadcast %92 : vector<16x1xf32> to vector<16x8xf32>
    %95 = vector.broadcast %93 : vector<1x8xf32> to vector<16x8xf32>
    %96 = arith.mulf %94, %95 : vector<16x8xf32>
    %97 = arith.addf %91, %96 : vector<16x8xf32>
    %98 = vector.extract_strided_slice %0 {offsets = [0, 16], sizes = [16, 1], strides = [1, 1]} : vector<16x23xf32> to vector<16x1xf32>
    %99 = vector.extract_strided_slice %23 {offsets = [12, 0], sizes = [1, 8], strides = [1, 1]} : vector<16x8xf32> to vector<1x8xf32>
    %100 = vector.broadcast %98 : vector<16x1xf32> to vector<16x8xf32>
    %101 = vector.broadcast %99 : vector<1x8xf32> to vector<16x8xf32>
    %102 = arith.mulf %100, %101 : vector<16x8xf32>
    %103 = arith.addf %97, %102 : vector<16x8xf32>
    %104 = vector.extract_strided_slice %0 {offsets = [0, 17], sizes = [16, 1], strides = [1, 1]} : vector<16x23xf32> to vector<16x1xf32>
    %105 = vector.extract_strided_slice %23 {offsets = [13, 0], sizes = [1, 8], strides = [1, 1]} : vector<16x8xf32> to vector<1x8xf32>
    %106 = vector.broadcast %104 : vector<16x1xf32> to vector<16x8xf32>
    %107 = vector.broadcast %105 : vector<1x8xf32> to vector<16x8xf32>
    %108 = arith.mulf %106, %107 : vector<16x8xf32>
    %109 = arith.addf %103, %108 : vector<16x8xf32>
    %110 = vector.extract_strided_slice %0 {offsets = [0, 18], sizes = [16, 1], strides = [1, 1]} : vector<16x23xf32> to vector<16x1xf32>
    %111 = vector.extract_strided_slice %23 {offsets = [14, 0], sizes = [1, 8], strides = [1, 1]} : vector<16x8xf32> to vector<1x8xf32>
    %112 = vector.broadcast %110 : vector<16x1xf32> to vector<16x8xf32>
    %113 = vector.broadcast %111 : vector<1x8xf32> to vector<16x8xf32>
    %114 = arith.mulf %112, %113 : vector<16x8xf32>
    %115 = arith.addf %109, %114 : vector<16x8xf32>
    %116 = vector.extract_strided_slice %0 {offsets = [0, 19], sizes = [16, 1], strides = [1, 1]} : vector<16x23xf32> to vector<16x1xf32>
    %117 = vector.extract_strided_slice %23 {offsets = [15, 0], sizes = [1, 8], strides = [1, 1]} : vector<16x8xf32> to vector<1x8xf32>
    %118 = vector.broadcast %116 : vector<16x1xf32> to vector<16x8xf32>
    %119 = vector.broadcast %117 : vector<1x8xf32> to vector<16x8xf32>
    %120 = arith.mulf %118, %119 : vector<16x8xf32>
    %121 = arith.addf %115, %120 : vector<16x8xf32>
    %cst_3 = arith.constant 0.000000e+00 : f32
    %122 = vector.broadcast %cst_3 : f32 to vector<16x8xf32>
    %123 = arith.maximumf %121, %122 : vector<16x8xf32>
    %124 = vector.extract_strided_slice %0 {offsets = [0, 21], sizes = [16, 1], strides = [1, 1]} : vector<16x23xf32> to vector<16x1xf32>
    %125 = vector.extract_strided_slice %0 {offsets = [0, 22], sizes = [1, 1], strides = [1, 1]} : vector<16x23xf32> to vector<1x1xf32>
    %126 = vector.broadcast %124 : vector<16x1xf32> to vector<16x8xf32>
    %127 = arith.mulf %123, %126 : vector<16x8xf32>
    %cst_4 = arith.constant dense<0.000000e+00> : vector<8xf32>
    %128 = vector.multi_reduction <add>, %127, %cst_4 [0] : vector<16x8xf32> to vector<8xf32>
    %129 = vector.shape_cast %128 : vector<8xf32> to vector<1x8xf32>
    %130 = vector.broadcast %125 : vector<1x1xf32> to vector<1x8xf32>
    %131 = arith.addf %129, %130 : vector<1x8xf32>
    %c0_5 = arith.constant 0 : index
    %c0_6 = arith.constant 0 : index
    %132 = vector.load %arg3[%c0_5, %c0_6] : memref<1x8xf32, #tpu.memory_space<vmem>>, vector<1x8xf32>
    tpu.vector_store %arg3[%c0_5, %c0_6], %131 {strides = array<i32>} : memref<1x8xf32, #tpu.memory_space<vmem>>, vector<1x8xf32>,
    return
  }
  func.func @transform_0(%arg0: i32) -> (i32, i32) {
    %c0_i32 = arith.constant 0 : i32
    %c0_i32_0 = arith.constant 0 : i32
    return %c0_i32, %arg0 : i32, i32
  }
  func.func @transform_1(%arg0: i32) -> (i32, i32) {
    %c0_i32 = arith.constant 0 : i32
    %c0_i32_0 = arith.constant 0 : i32
    %c0_i32_1 = arith.constant 0 : i32
    return %c0_i32, %c0_i32_0 : i32, i32
  }
  func.func @transform_2(%arg0: i32) -> (i32, i32) {
    %c0_i32 = arith.constant 0 : i32
    %c0_i32_0 = arith.constant 0 : i32
    return %c0_i32, %arg0 : i32, i32
  }
}

</mosaic_0001>

<llo_original>
// kernel: tpu_custom_call.1
$region0: #{tpu_custom_call.1}
  #allocation0 [shape = 'u32[]', space=smem, size = 0x4, offset = 0x4, fixed_abs, tag = 'smem constant byte address 0x4 - core index']
  #allocation1 [shape = 'u32[144,128]{1,0:T(1,128)}', space=vmem, size = 0x12000, scoped, tag = 'internal scratch']
  %s0 = inlined_call_operand.hbm [shape: f32[3,8], index: 0, kind: input, shape index: {}]
  %s1 = inlined_call_operand.hbm [shape: f32[16,23], index: 1, kind: input, shape index: {}]
  %s2 = inlined_call_operand.hbm [shape: f32[1,8], index: 2, kind: output, shape index: {}]
  %s3 = sld [smem:[#allocation0]]
  $region26: #{tpu_custom_call.1} parent=0
    _
  %s5 = ssub.s32 1, %s3
  %s6 = scalar_select 0, %s5, %s3
  $region1: #{tpu_custom_call.1} parent=0
    #allocation2 [shape = 'u8[2048]{0}', space=vmem, size = 0x800, scoped, tag = 'input window, operand 0, single buffered']
    #allocation3 [shape = 's32[1]{0}', space=sflag, size = 0x4, scoped, tag = 'scoped memory for tpu_custom_call.1']
    #allocation4 [shape = 's32[1]{0}', space=sflag, size = 0x4, scoped, tag = 'scoped memory for tpu_custom_call.1']
    #allocation5 [shape = 'u8[8192]{0}', space=vmem, size = 0x2000, scoped, tag = 'input window, operand 1, single buffered']
    #allocation6 [shape = 's32[1]{0}', space=sflag, size = 0x4, scoped, tag = 'scoped memory for tpu_custom_call.1']
    #allocation7 [shape = 'u8[512]{0}', space=vmem, size = 0x400, scoped, tag = 'output window, operand 0, single buffered']
    %7 = vsyncpa [#allocation3], 0
    %8 = vsyncpa [#allocation6], 0
    %9 = vsyncpa [#allocation4], 0
    // Predicated region
    $region2: #{tpu_custom_call.1} parent=1 // pred_check
      _
    $region3: #{tpu_custom_call.1} parent=1 // pred_check_branch
      %11 = sbr.rel (0) target = $region5
    $region4: #{tpu_custom_call.1} parent=1 // pred_region
      %s13 = ssub.s32 64, 64
      %14 = vsyncadd [#allocation3], %s13
      %s16 = sshll.u32 [#allocation2], 4
      %s17 = int_to_ptr.vmem [resolvable:$true] %s16
      %19 = dma.hbm_to_vmem [thread:$0]  %s0, 64, %s17, [#allocation3]
    $region5: #{tpu_custom_call.1} parent=1 // pred_fallthru
      _
    // Predicated region
    $region6: #{tpu_custom_call.1} parent=1 // pred_check
      _
    $region7: #{tpu_custom_call.1} parent=1 // pred_check_branch
      %21 = sbr.rel (0) target = $region9
    $region8: #{tpu_custom_call.1} parent=1 // pred_region
      %s23 = ssub.s32 256, 256
      %24 = vsyncadd [#allocation6], %s23
      %s25 = sshll.u32 [#allocation5], 4
      %s26 = int_to_ptr.vmem [resolvable:$true] %s25
      %31 = dma.hbm_to_vmem [thread:$0]  %s1, 256, %s26, [#allocation6], 128, 128, 8
    $region9: #{tpu_custom_call.1} parent=1 // pred_fallthru
      _
    // Predicated region
    $region10: #{tpu_custom_call.1} parent=1 // pred_check
      _
    $region11: #{tpu_custom_call.1} parent=1 // pred_check_branch
      %33 = sbr.rel (0) target = $region13
    $region12: #{tpu_custom_call.1} parent=1 // pred_region
      %34 = dma.done [#allocation3], 64
    $region13: #{tpu_custom_call.1} parent=1 // pred_fallthru
      _
    // Predicated region
    $region14: #{tpu_custom_call.1} parent=1 // pred_check
      _
    $region15: #{tpu_custom_call.1} parent=1 // pred_check_branch
      %36 = sbr.rel (0) target = $region17
    $region16: #{tpu_custom_call.1} parent=1 // pred_region
      %37 = dma.done [#allocation6], 256
    $region17: #{tpu_custom_call.1} parent=1 // pred_fallthru
      _
    %v38 = vld [vmem:[#allocation5] sm:$0xff]
    %v39 = vld [vmem:[#allocation5 + $0x8] sm:$0xff]
    %v40 = vld [vmem:[#allocation2] sm:$0x7]
    %42 = vset.pattern.permute.xlu0 0
    %43 = vperm.xlu0 %42, %v38
    %v44 = vpop.permute.xlu0 %43
    %47 = vset.pattern.permute.xlu0 0
    %48 = vperm.xlu0 %47, %v39
    %v49 = vpop.permute.xlu0 %48
    %v51 = vlaneseq
    %v52 = vshrl.u32 %v51, 7
    %v53 = vsub.s32 0, %v52
    %v54 = vrot.slane %v40, %v53
    %v55 = vmul.f32 %v44, %v54
    %v56 = vmul.f32 %v49, %v54
    %57 = vset.pattern.permute.xlu0 3
    %58 = vperm.xlu0 %57, %v38
    %v59 = vpop.permute.xlu0 %58
    %61 = vset.pattern.permute.xlu0 3
    %62 = vperm.xlu0 %61, %v39
    %v63 = vpop.permute.xlu0 %62
    %v65 = vadd.f32 %v59, %v55
    %v66 = vadd.f32 %v63, %v56
    %67 = vset.pattern.permute.xlu0 1
    %68 = vperm.xlu0 %67, %v38
    %v69 = vpop.permute.xlu0 %68
    %71 = vset.pattern.permute.xlu0 1
    %72 = vperm.xlu0 %71, %v39
    %v73 = vpop.permute.xlu0 %72
    %v75 = vlaneseq
    %v76 = vshrl.u32 %v75, 7
    %v77 = vsub.s32 1, %v76
    %v78 = vrot.slane %v40, %v77
    %v79 = vmul.f32 %v69, %v78
    %v80 = vmul.f32 %v73, %v78
    %v81 = vadd.f32 %v65, %v79
    %v82 = vadd.f32 %v66, %v80
    %83 = vset.pattern.permute.xlu0 2
    %84 = vperm.xlu0 %83, %v38
    %v85 = vpop.permute.xlu0 %84
    %87 = vset.pattern.permute.xlu0 2
    %88 = vperm.xlu0 %87, %v39
    %v89 = vpop.permute.xlu0 %88
    %v91 = vlaneseq
    %v92 = vshrl.u32 %v91, 7
    %v93 = vsub.s32 2, %v92
    %v94 = vrot.slane %v40, %v93
    %v95 = vmul.f32 %v85, %v94
    %v96 = vmul.f32 %v89, %v94
    %v97 = vadd.f32 %v81, %v95
    %v98 = vadd.f32 %v82, %v96
    %v99 = vmax.f32 %v97, 0.0
    %v100 = vmax.f32 %v98, 0.0
    %101 = vset.pattern.permute.xlu0 4
    %102 = vperm.xlu0 %101, %v38
    %v103 = vpop.permute.xlu0 %102
    %105 = vset.pattern.permute.xlu0 4
    %106 = vperm.xlu0 %105, %v39
    %v107 = vpop.permute.xlu0 %106
    %v109 = vlaneseq
    %v110 = vshrl.u32 %v109, 7
    %v111 = vsub.s32 0, %v110
    %v112 = vrot.slane %v99, %v111
    %v113 = vmul.f32 %v103, %v112
    %v114 = vmul.f32 %v107, %v112
    %115 = vset.pattern.permute.xlu0 20
    %116 = vperm.xlu0 %115, %v38
    %v117 = vpop.permute.xlu0 %116
    %119 = vset.pattern.permute.xlu0 20
    %120 = vperm.xlu0 %119, %v39
    %v121 = vpop.permute.xlu0 %120
    %v123 = vadd.f32 %v117, %v113
    %v124 = vadd.f32 %v121, %v114
    %125 = vset.pattern.permute.xlu0 5
    %126 = vperm.xlu0 %125, %v38
    %v127 = vpop.permute.xlu0 %126
    %129 = vset.pattern.permute.xlu0 5
    %130 = vperm.xlu0 %129, %v39
    %v131 = vpop.permute.xlu0 %130
    %v133 = vlaneseq
    %v134 = vshrl.u32 %v133, 7
    %v135 = vsub.s32 1, %v134
    %v136 = vrot.slane %v99, %v135
    %v137 = vmul.f32 %v127, %v136
    %v138 = vmul.f32 %v131, %v136
    %v139 = vadd.f32 %v123, %v137
    %v140 = vadd.f32 %v124, %v138
    %141 = vset.pattern.permute.xlu0 6
    %142 = vperm.xlu0 %141, %v38
    %v143 = vpop.permute.xlu0 %142
    %145 = vset.pattern.permute.xlu0 6
    %146 = vperm.xlu0 %145, %v39
    %v147 = vpop.permute.xlu0 %146
    %v149 = vlaneseq
    %v150 = vshrl.u32 %v149, 7
    %v151 = vsub.s32 2, %v150
    %v152 = vrot.slane %v99, %v151
    %v153 = vmul.f32 %v143, %v152
    %v154 = vmul.f32 %v147, %v152
    %v155 = vadd.f32 %v139, %v153
    %v156 = vadd.f32 %v140, %v154
    %157 = vset.pattern.permute.xlu0 7
    %158 = vperm.xlu0 %157, %v38
    %v159 = vpop.permute.xlu0 %158
    %161 = vset.pattern.permute.xlu0 7
    %162 = vperm.xlu0 %161, %v39
    %v163 = vpop.permute.xlu0 %162
    %v165 = vlaneseq
    %v166 = vshrl.u32 %v165, 7
    %v167 = vsub.s32 3, %v166
    %v168 = vrot.slane %v99, %v167
    %v169 = vmul.f32 %v159, %v168
    %v170 = vmul.f32 %v163, %v168
    %v171 = vadd.f32 %v155, %v169
    %v172 = vadd.f32 %v156, %v170
    %173 = vset.pattern.permute.xlu0 8
    %174 = vperm.xlu0 %173, %v38
    %v175 = vpop.permute.xlu0 %174
    %177 = vset.pattern.permute.xlu0 8
    %178 = vperm.xlu0 %177, %v39
    %v179 = vpop.permute.xlu0 %178
    %v181 = vlaneseq
    %v182 = vshrl.u32 %v181, 7
    %v183 = vsub.s32 4, %v182
    %v184 = vrot.slane %v99, %v183
    %v185 = vmul.f32 %v175, %v184
    %v186 = vmul.f32 %v179, %v184
    %v187 = vadd.f32 %v171, %v185
    %v188 = vadd.f32 %v172, %v186
    %189 = vset.pattern.permute.xlu0 9
    %190 = vperm.xlu0 %189, %v38
    %v191 = vpop.permute.xlu0 %190
    %193 = vset.pattern.permute.xlu0 9
    %194 = vperm.xlu0 %193, %v39
    %v195 = vpop.permute.xlu0 %194
    %v197 = vlaneseq
    %v198 = vshrl.u32 %v197, 7
    %v199 = vsub.s32 5, %v198
    %v200 = vrot.slane %v99, %v199
    %v201 = vmul.f32 %v191, %v200
    %v202 = vmul.f32 %v195, %v200
    %v203 = vadd.f32 %v187, %v201
    %v204 = vadd.f32 %v188, %v202
    %205 = vset.pattern.permute.xlu0 10
    %206 = vperm.xlu0 %205, %v38
    %v207 = vpop.permute.xlu0 %206
    %209 = vset.pattern.permute.xlu0 10
    %210 = vperm.xlu0 %209, %v39
    %v211 = vpop.permute.xlu0 %210
    %v213 = vlaneseq
    %v214 = vshrl.u32 %v213, 7
    %v215 = vsub.s32 6, %v214
    %v216 = vrot.slane %v99, %v215
    %v217 = vmul.f32 %v207, %v216
    %v218 = vmul.f32 %v211, %v216
    %v219 = vadd.f32 %v203, %v217
    %v220 = vadd.f32 %v204, %v218
    %221 = vset.pattern.permute.xlu0 11
    %222 = vperm.xlu0 %221, %v38
    %v223 = vpop.permute.xlu0 %222
    %225 = vset.pattern.permute.xlu0 11
    %226 = vperm.xlu0 %225, %v39
    %v227 = vpop.permute.xlu0 %226
    %v229 = vlaneseq
    %v230 = vshrl.u32 %v229, 7
    %v231 = vsub.s32 7, %v230
    %v232 = vrot.slane %v99, %v231
    %v233 = vmul.f32 %v223, %v232
    %v234 = vmul.f32 %v227, %v232
    %v235 = vadd.f32 %v219, %v233
    %v236 = vadd.f32 %v220, %v234
    %237 = vset.pattern.permute.xlu0 12
    %238 = vperm.xlu0 %237, %v38
    %v239 = vpop.permute.xlu0 %238
    %241 = vset.pattern.permute.xlu0 12
    %242 = vperm.xlu0 %241, %v39
    %v243 = vpop.permute.xlu0 %242
    %v245 = vlaneseq
    %v246 = vshrl.u32 %v245, 7
    %v247 = vsub.s32 0, %v246
    %v248 = vrot.slane %v100, %v247
    %v249 = vmul.f32 %v239, %v248
    %v250 = vmul.f32 %v243, %v248
    %v251 = vadd.f32 %v235, %v249
    %v252 = vadd.f32 %v236, %v250
    %253 = vset.pattern.permute.xlu0 13
    %254 = vperm.xlu0 %253, %v38
    %v255 = vpop.permute.xlu0 %254
    %257 = vset.pattern.permute.xlu0 13
    %258 = vperm.xlu0 %257, %v39
    %v259 = vpop.permute.xlu0 %258
    %v261 = vlaneseq
    %v262 = vshrl.u32 %v261, 7
    %v263 = vsub.s32 1, %v262
    %v264 = vrot.slane %v100, %v263
    %v265 = vmul.f32 %v255, %v264
    %v266 = vmul.f32 %v259, %v264
    %v267 = vadd.f32 %v251, %v265
    %v268 = vadd.f32 %v252, %v266
    %269 = vset.pattern.permute.xlu0 14
    %270 = vperm.xlu0 %269, %v38
    %v271 = vpop.permute.xlu0 %270
    %273 = vset.pattern.permute.xlu0 14
    %274 = vperm.xlu0 %273, %v39
    %v275 = vpop.permute.xlu0 %274
    %v277 = vlaneseq
    %v278 = vshrl.u32 %v277, 7
    %v279 = vsub.s32 2, %v278
    %v280 = vrot.slane %v100, %v279
    %v281 = vmul.f32 %v271, %v280
    %v282 = vmul.f32 %v275, %v280
    %v283 = vadd.f32 %v267, %v281
    %v284 = vadd.f32 %v268, %v282
    %285 = vset.pattern.permute.xlu0 15
    %286 = vperm.xlu0 %285, %v38
    %v287 = vpop.permute.xlu0 %286
    %289 = vset.pattern.permute.xlu0 15
    %290 = vperm.xlu0 %289, %v39
    %v291 = vpop.permute.xlu0 %290
    %v293 = vlaneseq
    %v294 = vshrl.u32 %v293, 7
    %v295 = vsub.s32 3, %v294
    %v296 = vrot.slane %v100, %v295
    %v297 = vmul.f32 %v287, %v296
    %v298 = vmul.f32 %v291, %v296
    %v299 = vadd.f32 %v283, %v297
    %v300 = vadd.f32 %v284, %v298
    %301 = vset.pattern.permute.xlu0 16
    %302 = vperm.xlu0 %301, %v38
    %v303 = vpop.permute.xlu0 %302
    %305 = vset.pattern.permute.xlu0 16
    %306 = vperm.xlu0 %305, %v39
    %v307 = vpop.permute.xlu0 %306
    %v309 = vlaneseq
    %v310 = vshrl.u32 %v309, 7
    %v311 = vsub.s32 4, %v310
    %v312 = vrot.slane %v100, %v311
    %v313 = vmul.f32 %v303, %v312
    %v314 = vmul.f32 %v307, %v312
    %v315 = vadd.f32 %v299, %v313
    %v316 = vadd.f32 %v300, %v314
    %317 = vset.pattern.permute.xlu0 17
    %318 = vperm.xlu0 %317, %v38
    %v319 = vpop.permute.xlu0 %318
    %321 = vset.pattern.permute.xlu0 17
    %322 = vperm.xlu0 %321, %v39
    %v323 = vpop.permute.xlu0 %322
    %v325 = vlaneseq
    %v326 = vshrl.u32 %v325, 7
    %v327 = vsub.s32 5, %v326
    %v328 = vrot.slane %v100, %v327
    %v329 = vmul.f32 %v319, %v328
    %v330 = vmul.f32 %v323, %v328
    %v331 = vadd.f32 %v315, %v329
    %v332 = vadd.f32 %v316, %v330
    %333 = vset.pattern.permute.xlu0 18
    %334 = vperm.xlu0 %333, %v38
    %v335 = vpop.permute.xlu0 %334
    %337 = vset.pattern.permute.xlu0 18
    %338 = vperm.xlu0 %337, %v39
    %v339 = vpop.permute.xlu0 %338
    %v341 = vlaneseq
    %v342 = vshrl.u32 %v341, 7
    %v343 = vsub.s32 6, %v342
    %v344 = vrot.slane %v100, %v343
    %v345 = vmul.f32 %v335, %v344
    %v346 = vmul.f32 %v339, %v344
    %v347 = vadd.f32 %v331, %v345
    %v348 = vadd.f32 %v332, %v346
    %349 = vset.pattern.permute.xlu0 19
    %350 = vperm.xlu0 %349, %v38
    %v351 = vpop.permute.xlu0 %350
    %353 = vset.pattern.permute.xlu0 19
    %354 = vperm.xlu0 %353, %v39
    %v355 = vpop.permute.xlu0 %354
    %v357 = vlaneseq
    %v358 = vshrl.u32 %v357, 7
    %v359 = vsub.s32 7, %v358
    %v360 = vrot.slane %v100, %v359
    %v361 = vmul.f32 %v351, %v360
    %v362 = vmul.f32 %v355, %v360
    %v363 = vadd.f32 %v347, %v361
    %v364 = vadd.f32 %v348, %v362
    %v365 = vmax.f32 %v363, 0.0
    %v366 = vmax.f32 %v364, 0.0
    %367 = vset.pattern.permute.xlu0 21
    %368 = vperm.xlu0 %367, %v38
    %v369 = vpop.permute.xlu0 %368
    %371 = vset.pattern.permute.xlu0 21
    %372 = vperm.xlu0 %371, %v39
    %v373 = vpop.permute.xlu0 %372
    %v375 = vmul.f32 %v365, %v369
    %v376 = vmul.f32 %v366, %v373
    %vm377 = vcmask 64512
    %v378 = vsel %vm377, %v375, 0.0
    %v379 = vsel %vm377, %v376, 0.0
    %v380 = vadd.f32 %v378, %v379
    %v381 = vrot.slane %v380, 4
    %v382 = vadd.f32 %v380, %v381
    %v383 = vrot.slane %v382, 2
    %v384 = vadd.f32 %v382, %v383
    %v385 = vrot.slane %v384, 1
    %v386 = vadd.f32 %v384, %v385
    %387 = vset.pattern.permute.xlu0 22
    %388 = vperm.xlu0 %387, %v38
    %v389 = vpop.permute.xlu0 %388
    %v391 = vadd.f32 %v386, %v389
    %vm392 = vcmask 57344
    %393 = vst.msk [vmem:[#allocation7] sm:$0x1] %vm392, %v391
    // Predicated region
    $region18: #{tpu_custom_call.1} parent=1 // pred_check
      _
    $region19: #{tpu_custom_call.1} parent=1 // pred_check_branch
      %395 = sbr.rel (0) target = $region21
    $region20: #{tpu_custom_call.1} parent=1 // pred_region
      %s397 = ssub.s32 16, 16
      %398 = vsyncadd [#allocation4], %s397
      %s400 = sshll.u32 [#allocation7], 4
      %s401 = int_to_ptr.vmem [resolvable:$true] %s400
      %403 = dma.vmem_to_hbm [thread:$0]  %s401, 16, %s2, [#allocation4]
    $region21: #{tpu_custom_call.1} parent=1 // pred_fallthru
      _
    // Predicated region
    $region22: #{tpu_custom_call.1} parent=1 // pred_check
      _
    $region23: #{tpu_custom_call.1} parent=1 // pred_check_branch
      %405 = sbr.rel (0) target = $region25
    $region24: #{tpu_custom_call.1} parent=1 // pred_region
      %406 = dma.done [#allocation4], 16
    $region25: #{tpu_custom_call.1} parent=1 // pred_fallthru
      _
    %407 = vsyncpa [#allocation3], 1
    %408 = vsyncpa [#allocation6], 1
    %409 = vsyncpa [#allocation4], 1

</llo_original>
